<compile_context>
chip_gen: v7x
topology: tpu7x:2x2x1
jax: 0.10.0
libtpu: 0.0.40
codegen_flags: <defaults>
</compile_context>

<pallas_src>
import functools

import jax
import jax.numpy as jnp
from jax.experimental import pallas as pl
from jax.experimental.pallas import tpu as pltpu


def _round_up(x, m):
    return (x + m - 1) // m * m


def _cdiv(a, b):
    return (a + b - 1) // b


def _choose_batch_tile(B, block_b):
    """Largest batch tile <= block_b with bounded padding waste and >=2 grid steps."""
    n = max(1, _cdiv(B, block_b))          # tiles needed if capped at block_b
    if n < 2 and B > 8:                    # ensure >=2 steps so v7x's 2nd TC gets work
        n = 2
    TB = _round_up(_cdiv(B, n), 8)         # multiple of 8 sublanes
    B_pad = _round_up(B, TB)
    return TB, B_pad


# -----------------------------------------------------------------------------
# Kernel
# -----------------------------------------------------------------------------
def _vsn_kernel(x_ref, w13_ref, b13_ref, w2_ref, b2_ref, w4_ref, b4_ref, o_ref, *, hidden):
    # x tile -> bf16 for the MXU; accumulation stays f32.
    x = x_ref[...].astype(jnp.bfloat16)                                     # [TB, I]

    # Fused first layer: [fc1(x) | fc3(x)] in one MXU pass (2H lanes).
    h = jnp.dot(x, w13_ref[...], preferred_element_type=jnp.float32) + b13_ref[...]
    h1 = jnp.maximum(h[:, :hidden], 0.0).astype(jnp.bfloat16)               # relu(fc1(x))
    h2 = jnp.maximum(h[:, hidden:], 0.0).astype(jnp.bfloat16)               # relu(fc3(x))

    # Second layer: two dense dots (no zero blocks). b2's pad lanes are -1e30
    # and the weight pad lanes are 0, so x1 pad lanes are pre-masked for free.
    x1 = jnp.dot(h1, w2_ref[...], preferred_element_type=jnp.float32) + b2_ref[...]
    x2 = jnp.dot(h2, w4_ref[...], preferred_element_type=jnp.float32) + b4_ref[...]

    # sigmoid via a single EUP tanh (avoids exp overflow + second EUP op).
    gate = 0.5 * (jnp.tanh(0.5 * x2) + 1.0)
    g = x1 * gate                                                            # pad lanes ~ -5e29

    # Softmax; pad lanes contribute exp(-huge) == 0. Exact division on the
    # [TB, 1] denominator keeps row sums at 1 to f32 precision.
    m = jnp.max(g, axis=-1, keepdims=True)
    e = jnp.exp(g - m)
    denom = jnp.sum(e, axis=-1, keepdims=True)
    o_ref[...] = (e / denom).astype(o_ref.dtype)


# -----------------------------------------------------------------------------
# Host-side packing (one-time; hoisted out of the per-call path)
# -----------------------------------------------------------------------------
def pack_params(params):
    """Pack GRN weights for the kernel: bf16, lane-dense padding, bias-based masking."""
    I, H = params["w1"].shape
    I_pad = _round_up(I, 128)
    pad = I_pad - I

    w13 = jnp.concatenate([params["w1"], params["w3"]], axis=1).astype(jnp.bfloat16)  # [I, 2H]
    b13 = jnp.concatenate([params["b1"], params["b3"]], axis=1).astype(jnp.float32)   # [1, 2H]

    w2 = jnp.pad(params["w2"], ((0, 0), (0, pad))).astype(jnp.bfloat16)               # [H, I_pad]
    w4 = jnp.pad(params["w4"], ((0, 0), (0, pad))).astype(jnp.bfloat16)               # [H, I_pad]
    # fc2 bias: pad lanes at -1e30 mask the softmax pad lanes with zero kernel cost.
    b2 = jnp.pad(params["b2"], ((0, 0), (0, pad)), constant_values=-1e30).astype(jnp.float32)
    b4 = jnp.pad(params["b4"], ((0, 0), (0, pad))).astype(jnp.float32)

    return dict(w13=w13, b13=b13, w2=w2, b2=b2, w4=w4, b4=b4)


# -----------------------------------------------------------------------------
# Wrapper
# -----------------------------------------------------------------------------
def variable_selection_network(x, packed, *, context=None, block_b=512, trim=True):
    """x: [B, input_size] f32; packed: output of pack_params."""
    # TODO(synk): context concatenation path not implemented (only context=None is
    # consistent with the module's declared fc1/fc3 shapes).
    assert context is None, "context path not supported"

    B, I = x.shape
    H = packed["w13"].shape[1] // 2
    I_pad = packed["w2"].shape[1]
    assert packed["w13"].shape[0] == I, "input_size mismatch with packed params"

    TB, B_pad = _choose_batch_tile(B, block_b)
    x_pad = jnp.pad(x, ((0, B_pad - B), (0, 0))) if B_pad != B else x

    grid = (B_pad // TB,)
    kernel = functools.partial(_vsn_kernel, hidden=H)

    # VMEM budget: double-buffered x/out tiles + resident bf16 weights + margin.
    tile_bytes = 2 * TB * (I + I_pad) * 4
    weight_bytes = (I * 2 * H + 2 * H * I_pad) * 2 + (2 * H + 2 * I_pad) * 4
    vmem_budget = int(min(40 * 2**20, max(32 * 2**20, 2 * tile_bytes + weight_bytes + (2 << 20))))

    flops = 2 * B_pad * I * (2 * H) + 2 * (2 * B_pad * H * I_pad)
    transcendentals = 2 * B_pad * I_pad                         # tanh + exp
    bytes_accessed = (4 * B_pad * (I + I_pad)                   # x in + out
                      + 2 * (I * 2 * H + 2 * H * I_pad)         # bf16 weights
                      + 4 * (2 * H + 2 * I_pad))                # f32 biases

    out_pad = pl.pallas_call(
        kernel,
        out_shape=jax.ShapeDtypeStruct((B_pad, I_pad), jnp.float32),
        grid=grid,
        in_specs=[
            pl.BlockSpec((TB, I), lambda b: (b, 0)),            # x tile (pipelined over batch)
            pl.BlockSpec((I, 2 * H), lambda b: (0, 0)),         # fused fc1|fc3 weight (resident)
            pl.BlockSpec((1, 2 * H), lambda b: (0, 0)),         # fused b1|b3
            pl.BlockSpec((H, I_pad), lambda b: (0, 0)),         # fc2 weight (dense, padded)
            pl.BlockSpec((1, I_pad), lambda b: (0, 0)),         # fc2 bias (-1e30 pad lanes)
            pl.BlockSpec((H, I_pad), lambda b: (0, 0)),         # fc4 weight (dense, padded)
            pl.BlockSpec((1, I_pad), lambda b: (0, 0)),         # fc4 bias
        ],
        out_specs=pl.BlockSpec((TB, I_pad), lambda b: (b, 0)),  # lane-dense output slab
        compiler_params=pltpu.CompilerParams(
            dimension_semantics=("parallel",),
            vmem_limit_bytes=vmem_budget),
        cost_estimate=pl.CostEstimate(
            flops=flops,
            transcendentals=transcendentals,
            bytes_accessed=bytes_accessed),
    )(x_pad, packed["w13"], packed["b13"], packed["w2"], packed["b2"],
      packed["w4"], packed["b4"])

    if trim:
        # NOTE: consumers that accept the padded (B_pad, I_pad) slab can pass
        # trim=False and avoid this extra HBM read+write.
        return out_pad[:B, :I]
    return out_pad


# -----------------------------------------------------------------------------
# Init / reference / test
# -----------------------------------------------------------------------------
def init_params(key, input_size, hidden_size):
    """Deterministic synthetic init (nn.Linear shapes, stored transposed [in, out])."""
    ks = jax.random.split(key, 8)

    def lin(kw, kb, fan_in, fan_out):
        bound = 1.0 / jnp.sqrt(fan_in)
        w = jax.random.uniform(kw, (fan_in, fan_out), jnp.float32, -bound, bound)
        b = jax.random.uniform(kb, (1, fan_out), jnp.float32, -bound, bound)
        return w, b

    w1, b1 = lin(ks[0], ks[1], input_size, hidden_size)
    w2, b2 = lin(ks[2], ks[3], hidden_size, input_size)
    w3, b3 = lin(ks[4], ks[5], input_size, hidden_size)
    w4, b4 = lin(ks[6], ks[7], hidden_size, input_size)
    return dict(w1=w1, b1=b1, w2=w2, b2=b2, w3=w3, b3=b3, w4=w4, b4=b4)


def _reference(x, p):
    """Pure-JAX f32 reference of the PyTorch forward."""
    h1 = jnp.maximum(x @ p["w1"] + p["b1"], 0.0)
    x1 = h1 @ p["w2"] + p["b2"]
    h2 = jnp.maximum(x @ p["w3"] + p["b3"], 0.0)
    x2 = jax.nn.sigmoid(h2 @ p["w4"] + p["b4"])
    return jax.nn.softmax(x1 * x2, axis=-1)


if __name__ == "__main__":
    batch, input_size, hidden_size = 8, 16, 32

    key = jax.random.PRNGKey(0)
    kx, kp = jax.random.split(key)
    x = jax.random.normal(kx, (batch, input_size), jnp.float32)
    params = init_params(kp, input_size, hidden_size)
    packed = pack_params(params)   # one-time packing, hoisted out of the call path

    vsn = jax.jit(functools.partial(variable_selection_network, block_b=512))

    out = jax.block_until_ready(vsn(x, packed))
    ref = _reference(x, params)
    assert out.shape == (batch, input_size)
    assert jnp.allclose(out, ref, atol=1e-2, rtol=1e-2), "mismatch vs reference"
    assert jnp.allclose(jnp.sum(out, axis=-1), 1.0, atol=1e-5), "softmax rows must sum to 1"

    # Non-multiple-of-tile batch: exercises >=2 grid steps (megacore) + padding path
    # with bounded waste (600 -> 608 rows, TB=304).
    xb = jax.random.normal(jax.random.PRNGKey(1), (600, input_size), jnp.float32)
    outb = jax.block_until_ready(vsn(xb, packed))
    refb = _reference(xb, params)
    assert outb.shape == (600, input_size)
    assert jnp.allclose(outb, refb, atol=1e-2, rtol=1e-2), "mismatch vs reference (big batch)"
    assert jnp.allclose(jnp.sum(outb, axis=-1), 1.0, atol=1e-5), "row sums (big batch)"

    print("KERNEL_OK")
</pallas_src>

<mosaic_0001>
module attributes {stable_mosaic.version = 11 : i64} {
  func.func @_vsn_kernel(%arg0: i32, %arg1: memref<8x16xf32, #tpu.memory_space<vmem>>, %arg2: memref<16x64xbf16, #tpu.memory_space<vmem>>, %arg3: memref<1x64xf32, #tpu.memory_space<vmem>>, %arg4: memref<32x128xbf16, #tpu.memory_space<vmem>>, %arg5: memref<1x128xf32, #tpu.memory_space<vmem>>, %arg6: memref<32x128xbf16, #tpu.memory_space<vmem>>, %arg7: memref<1x128xf32, #tpu.memory_space<vmem>>, %arg8: memref<8x128xf32, #tpu.memory_space<vmem>>) attributes {dimension_semantics = [#tpu.dimension_semantics<parallel>], iteration_bounds = array<i64: 1>, scalar_prefetch = 0 : i64, scratch_operands = 0 : i64, tpu.core_type = #tpu.core_type<tc>, window_params = [{transform_indices = @transform_0, window_bounds = array<i64: 8, 16>}, {pipeline_mode = #tpu.pipeline_mode<synchronous>, transform_indices = @transform_1, window_bounds = array<i64: 16, 64>}, {pipeline_mode = #tpu.pipeline_mode<synchronous>, transform_indices = @transform_2, window_bounds = array<i64: 1, 64>}, {pipeline_mode = #tpu.pipeline_mode<synchronous>, transform_indices = @transform_3, window_bounds = array<i64: 32, 128>}, {pipeline_mode = #tpu.pipeline_mode<synchronous>, transform_indices = @transform_4, window_bounds = array<i64: 1, 128>}, {pipeline_mode = #tpu.pipeline_mode<synchronous>, transform_indices = @transform_5, window_bounds = array<i64: 32, 128>}, {pipeline_mode = #tpu.pipeline_mode<synchronous>, transform_indices = @transform_6, window_bounds = array<i64: 1, 128>}, {transform_indices = @transform_7, window_bounds = array<i64: 8, 128>}]} {
    %c0 = arith.constant 0 : index
    %c0_0 = arith.constant 0 : index
    %0 = vector.load %arg1[%c0, %c0_0] : memref<8x16xf32, #tpu.memory_space<vmem>>, vector<8x16xf32>
    %1 = arith.truncf %0 : vector<8x16xf32> to vector<8x16xbf16>
    %c0_1 = arith.constant 0 : index
    %c0_2 = arith.constant 0 : index
    %2 = vector.load %arg2[%c0_1, %c0_2] : memref<16x64xbf16, #tpu.memory_space<vmem>>, vector<16x64xbf16>
    %cst = arith.constant dense<0.000000e+00> : vector<8x64xf32>
    %3 = tpu.matmul %1, %2, %cst {dimension_numbers = #tpu.dot_dimension_numbers<[1], [0], [0], [1], [0, 0, 1, 1], [], []>} : vector<8x16xbf16>, vector<16x64xbf16>, vector<8x64xf32> -> vector<8x64xf32>
    %c0_3 = arith.constant 0 : index
    %c0_4 = arith.constant 0 : index
    %4 = vector.load %arg3[%c0_3, %c0_4] : memref<1x64xf32, #tpu.memory_space<vmem>>, vector<1x64xf32>
    %5 = vector.broadcast %4 : vector<1x64xf32> to vector<8x64xf32>
    %6 = arith.addf %3, %5 : vector<8x64xf32>
    %7 = vector.extract_strided_slice %6 {offsets = [0, 0], sizes = [8, 32], strides = [1, 1]} : vector<8x64xf32> to vector<8x32xf32>
    %cst_5 = arith.constant 0.000000e+00 : f32
    %8 = vector.broadcast %cst_5 : f32 to vector<8x32xf32>
    %9 = arith.maximumf %7, %8 : vector<8x32xf32>
    %10 = arith.truncf %9 : vector<8x32xf32> to vector<8x32xbf16>
    %11 = vector.extract_strided_slice %6 {offsets = [0, 32], sizes = [8, 32], strides = [1, 1]} : vector<8x64xf32> to vector<8x32xf32>
    %cst_6 = arith.constant 0.000000e+00 : f32
    %12 = vector.broadcast %cst_6 : f32 to vector<8x32xf32>
    %13 = arith.maximumf %11, %12 : vector<8x32xf32>
    %14 = arith.truncf %13 : vector<8x32xf32> to vector<8x32xbf16>
    %c0_7 = arith.constant 0 : index
    %c0_8 = arith.constant 0 : index
    %15 = vector.load %arg4[%c0_7, %c0_8] : memref<32x128xbf16, #tpu.memory_space<vmem>>, vector<32x128xbf16>
    %cst_9 = arith.constant dense<0.000000e+00> : vector<8x128xf32>
    %16 = tpu.matmul %10, %15, %cst_9 {dimension_numbers = #tpu.dot_dimension_numbers<[1], [0], [0], [1], [0, 0, 1, 1], [], []>} : vector<8x32xbf16>, vector<32x128xbf16>, vector<8x128xf32> -> vector<8x128xf32>
    %c0_10 = arith.constant 0 : index
    %c0_11 = arith.constant 0 : index
    %17 = vector.load %arg5[%c0_10, %c0_11] : memref<1x128xf32, #tpu.memory_space<vmem>>, vector<1x128xf32>
    %18 = vector.broadcast %17 : vector<1x128xf32> to vector<8x128xf32>
    %19 = arith.addf %16, %18 : vector<8x128xf32>
    %c0_12 = arith.constant 0 : index
    %c0_13 = arith.constant 0 : index
    %20 = vector.load %arg6[%c0_12, %c0_13] : memref<32x128xbf16, #tpu.memory_space<vmem>>, vector<32x128xbf16>
    %cst_14 = arith.constant dense<0.000000e+00> : vector<8x128xf32>
    %21 = tpu.matmul %14, %20, %cst_14 {dimension_numbers = #tpu.dot_dimension_numbers<[1], [0], [0], [1], [0, 0, 1, 1], [], []>} : vector<8x32xbf16>, vector<32x128xbf16>, vector<8x128xf32> -> vector<8x128xf32>
    %c0_15 = arith.constant 0 : index
    %c0_16 = arith.constant 0 : index
    %22 = vector.load %arg7[%c0_15, %c0_16] : memref<1x128xf32, #tpu.memory_space<vmem>>, vector<1x128xf32>
    %23 = vector.broadcast %22 : vector<1x128xf32> to vector<8x128xf32>
    %24 = arith.addf %21, %23 : vector<8x128xf32>
    %cst_17 = arith.constant 5.000000e-01 : f32
    %25 = vector.broadcast %cst_17 : f32 to vector<8x128xf32>
    %26 = arith.mulf %25, %24 : vector<8x128xf32>
    %27 = math.tanh %26 : vector<8x128xf32>
    %cst_18 = arith.constant 1.000000e+00 : f32
    %28 = vector.broadcast %cst_18 : f32 to vector<8x128xf32>
    %29 = arith.addf %27, %28 : vector<8x128xf32>
    %cst_19 = arith.constant 5.000000e-01 : f32
    %30 = vector.broadcast %cst_19 : f32 to vector<8x128xf32>
    %31 = arith.mulf %30, %29 : vector<8x128xf32>
    %32 = arith.mulf %19, %31 : vector<8x128xf32>
    %cst_20 = arith.constant dense<0xFF800000> : vector<8xf32>
    %33 = vector.multi_reduction <maximumf>, %32, %cst_20 [1] : vector<8x128xf32> to vector<8xf32>
    %34 = vector.shape_cast %33 : vector<8xf32> to vector<8x1xf32>
    %35 = vector.broadcast %34 : vector<8x1xf32> to vector<8x128xf32>
    %36 = arith.subf %32, %35 : vector<8x128xf32>
    %37 = math.exp %36 : vector<8x128xf32>
    %cst_21 = arith.constant dense<0.000000e+00> : vector<8xf32>
    %38 = vector.multi_reduction <add>, %37, %cst_21 [1] : vector<8x128xf32> to vector<8xf32>
    %39 = vector.shape_cast %38 : vector<8xf32> to vector<8x1xf32>
    %40 = vector.broadcast %39 : vector<8x1xf32> to vector<8x128xf32>
    %41 = arith.divf %37, %40 : vector<8x128xf32>
    %c0_22 = arith.constant 0 : index
    %c0_23 = arith.constant 0 : index
    %42 = vector.load %arg8[%c0_22, %c0_23] : memref<8x128xf32, #tpu.memory_space<vmem>>, vector<8x128xf32>
    tpu.vector_store %arg8[%c0_22, %c0_23], %41 {strides = array<i32>} : memref<8x128xf32, #tpu.memory_space<vmem>>, vector<8x128xf32>,
    return
  }
  func.func @transform_0(%arg0: i32) -> (i32, i32) {
    %c0_i32 = arith.constant 0 : i32
    %c0_i32_0 = arith.constant 0 : i32
    return %arg0, %c0_i32 : i32, i32
  }
  func.func @transform_1(%arg0: i32) -> (i32, i32) {
    %c0_i32 = arith.constant 0 : i32
    %c0_i32_0 = arith.constant 0 : i32
    %c0_i32_1 = arith.constant 0 : i32
    return %c0_i32, %c0_i32_0 : i32, i32
  }
  func.func @transform_2(%arg0: i32) -> (i32, i32) {
    %c0_i32 = arith.constant 0 : i32
    %c0_i32_0 = arith.constant 0 : i32
    %c0_i32_1 = arith.constant 0 : i32
    return %c0_i32, %c0_i32_0 : i32, i32
  }
  func.func @transform_3(%arg0: i32) -> (i32, i32) {
    %c0_i32 = arith.constant 0 : i32
    %c0_i32_0 = arith.constant 0 : i32
    %c0_i32_1 = arith.constant 0 : i32
    return %c0_i32, %c0_i32_0 : i32, i32
  }
  func.func @transform_4(%arg0: i32) -> (i32, i32) {
    %c0_i32 = arith.constant 0 : i32
    %c0_i32_0 = arith.constant 0 : i32
    %c0_i32_1 = arith.constant 0 : i32
    return %c0_i32, %c0_i32_0 : i32, i32
  }
  func.func @transform_5(%arg0: i32) -> (i32, i32) {
    %c0_i32 = arith.constant 0 : i32
    %c0_i32_0 = arith.constant 0 : i32
    %c0_i32_1 = arith.constant 0 : i32
    return %c0_i32, %c0_i32_0 : i32, i32
  }
  func.func @transform_6(%arg0: i32) -> (i32, i32) {
    %c0_i32 = arith.constant 0 : i32
    %c0_i32_0 = arith.constant 0 : i32
    %c0_i32_1 = arith.constant 0 : i32
    return %c0_i32, %c0_i32_0 : i32, i32
  }
  func.func @transform_7(%arg0: i32) -> (i32, i32) {
    %c0_i32 = arith.constant 0 : i32
    %c0_i32_0 = arith.constant 0 : i32
    return %arg0, %c0_i32 : i32, i32
  }
}

</mosaic_0001>

<llo_original>
// kernel: variable_selection_network.1
$region0: #{variable_selection_network.1}
  #allocation0 [shape = 'u32[]', space=smem, size = 0x4, offset = 0x4, fixed_abs, tag = 'smem constant byte address 0x4 - core index']
  #allocation1 [shape = 'u32[144,128]{1,0:T(1,128)}', space=vmem, size = 0x12000, scoped, tag = 'internal scratch']
  %s0 = inlined_call_operand.hbm [shape: f32[8,16], index: 0, kind: input, shape index: {}]
  %s1 = inlined_call_operand.hbm [shape: bf16[16,64], index: 1, kind: input, shape index: {}]
  %s2 = inlined_call_operand.vmem [shape: f32[1,64], index: 2, kind: input, shape index: {}]
  %s3 = inlined_call_operand.vmem [shape: bf16[32,128], index: 3, kind: input, shape index: {}]
  %s4 = inlined_call_operand.vmem [shape: f32[1,128], index: 4, kind: input, shape index: {}]
  %s5 = inlined_call_operand.hbm [shape: bf16[32,128], index: 5, kind: input, shape index: {}]
  %s6 = inlined_call_operand.hbm [shape: f32[1,128], index: 6, kind: input, shape index: {}]
  %s7 = inlined_call_operand.hbm [shape: f32[8,128], index: 7, kind: output, shape index: {}]
  %s8 = sld [smem:[#allocation0]]
  $region54: #{variable_selection_network.1} parent=0
    _
  %s10 = ssub.s32 1, %s8
  %s11 = scalar_select 0, %s10, %s8
  $region1: #{variable_selection_network.1} parent=0
    #allocation2 [shape = 'u8[4096]{0}', space=vmem, size = 0x1000, scoped, tag = 'input window, operand 0, single buffered']
    #allocation3 [shape = 's32[1]{0}', space=sflag, size = 0x4, scoped, tag = 'scoped memory for variable_selection_network.1']
    #allocation4 [shape = 's32[1]{0}', space=sflag, size = 0x4, scoped, tag = 'scoped memory for variable_selection_network.1']
    #allocation5 [shape = 'u8[4096]{0}', space=vmem, size = 0x1000, scoped, tag = 'input window, operand 1, single buffered']
    #allocation6 [shape = 's32[1]{0}', space=sflag, size = 0x4, scoped, tag = 'scoped memory for variable_selection_network.1']
    #allocation7 [shape = 'u8[8192]{0}', space=vmem, size = 0x2000, scoped, tag = 'input window, operand 5, single buffered']
    #allocation8 [shape = 'u8[512]{0}', space=vmem, size = 0x400, scoped, tag = 'input window, operand 6, single buffered']
    #allocation9 [shape = 's32[1]{0}', space=sflag, size = 0x4, scoped, tag = 'scoped memory for variable_selection_network.1']
    #allocation10 [shape = 'u8[4096]{0}', space=vmem, size = 0x1000, scoped, tag = 'output window, operand 0, single buffered']
    %12 = vsyncpa [#allocation3], 0
    %13 = vsyncpa [#allocation6], 0
    %14 = vsyncpa [#allocation9], 0
    %15 = vsyncpa [#allocation4], 0
    // Predicated region
    $region2: #{variable_selection_network.1} parent=1 // pred_check
      _
    $region3: #{variable_selection_network.1} parent=1 // pred_check_branch
      %17 = sbr.rel (0) target = $region5
    $region4: #{variable_selection_network.1} parent=1 // pred_region
      %s19 = ssub.s32 128, 128
      %20 = vsyncadd [#allocation3], %s19
      %s22 = sshll.u32 [#allocation2], 4
      %s23 = int_to_ptr.vmem [resolvable:$true] %s22
      %25 = dma.hbm_to_vmem [thread:$0]  %s0, 128, %s23, [#allocation3]
    $region5: #{variable_selection_network.1} parent=1 // pred_fallthru
      _
    // Predicated region
    $region6: #{variable_selection_network.1} parent=1 // pred_check
      _
    $region7: #{variable_selection_network.1} parent=1 // pred_check_branch
      %27 = sbr.rel (0) target = $region9
    $region8: #{variable_selection_network.1} parent=1 // pred_region
      %s29 = ssub.s32 128, 128
      %30 = vsyncadd [#allocation6], %s29
      %s31 = sshll.u32 [#allocation5], 4
      %s32 = int_to_ptr.vmem [resolvable:$true] %s31
      %37 = dma.hbm_to_vmem [thread:$0]  %s1, 128, %s32, [#allocation6], 64, 64, 4
    $region9: #{variable_selection_network.1} parent=1 // pred_fallthru
      _
    // Predicated region
    $region10: #{variable_selection_network.1} parent=1 // pred_check
      _
    $region11: #{variable_selection_network.1} parent=1 // pred_check_branch
      %39 = sbr.rel (0) target = $region13
    $region12: #{variable_selection_network.1} parent=1 // pred_region
      _
    $region13: #{variable_selection_network.1} parent=1 // pred_fallthru
      _
    // Predicated region
    $region14: #{variable_selection_network.1} parent=1 // pred_check
      _
    $region15: #{variable_selection_network.1} parent=1 // pred_check_branch
      %41 = sbr.rel (0) target = $region17
    $region16: #{variable_selection_network.1} parent=1 // pred_region
      _
    $region17: #{variable_selection_network.1} parent=1 // pred_fallthru
      _
    // Predicated region
    $region18: #{variable_selection_network.1} parent=1 // pred_check
      _
    $region19: #{variable_selection_network.1} parent=1 // pred_check_branch
      %43 = sbr.rel (0) target = $region21
    $region20: #{variable_selection_network.1} parent=1 // pred_region
      _
    $region21: #{variable_selection_network.1} parent=1 // pred_fallthru
      _
    // Predicated region
    $region22: #{variable_selection_network.1} parent=1 // pred_check
      _
    $region23: #{variable_selection_network.1} parent=1 // pred_check_branch
      %45 = sbr.rel (0) target = $region25
    $region24: #{variable_selection_network.1} parent=1 // pred_region
      %s47 = ssub.s32 256, 256
      %48 = vsyncadd [#allocation6], %s47
      %s49 = sshll.u32 [#allocation7], 4
      %s50 = int_to_ptr.vmem [resolvable:$true] %s49
      %55 = dma.hbm_to_vmem [thread:$0]  %s5, 256, %s50, [#allocation6], 64, 64, 4
    $region25: #{variable_selection_network.1} parent=1 // pred_fallthru
      _
    // Predicated region
    $region26: #{variable_selection_network.1} parent=1 // pred_check
      _
    $region27: #{variable_selection_network.1} parent=1 // pred_check_branch
      %57 = sbr.rel (0) target = $region29
    $region28: #{variable_selection_network.1} parent=1 // pred_region
      %s59 = ssub.s32 16, 16
      %60 = vsyncadd [#allocation9], %s59
      %s62 = sshll.u32 [#allocation8], 4
      %s63 = int_to_ptr.vmem [resolvable:$true] %s62
      %65 = dma.hbm_to_vmem [thread:$0]  %s6, 16, %s63, [#allocation9]
    $region29: #{variable_selection_network.1} parent=1 // pred_fallthru
      _
    // Predicated region
    $region30: #{variable_selection_network.1} parent=1 // pred_check
      _
    $region31: #{variable_selection_network.1} parent=1 // pred_check_branch
      %67 = sbr.rel (0) target = $region33
    $region32: #{variable_selection_network.1} parent=1 // pred_region
      %68 = dma.done [#allocation3], 128
    $region33: #{variable_selection_network.1} parent=1 // pred_fallthru
      _
    // Predicated region
    $region34: #{variable_selection_network.1} parent=1 // pred_check
      _
    $region35: #{variable_selection_network.1} parent=1 // pred_check_branch
      %70 = sbr.rel (0) target = $region37
    $region36: #{variable_selection_network.1} parent=1 // pred_region
      %71 = dma.done [#allocation6], 128
    $region37: #{variable_selection_network.1} parent=1 // pred_fallthru
      _
    // Predicated region
    $region38: #{variable_selection_network.1} parent=1 // pred_check
      _
    $region39: #{variable_selection_network.1} parent=1 // pred_check_branch
      %73 = sbr.rel (0) target = $region41
    $region40: #{variable_selection_network.1} parent=1 // pred_region
      %74 = dma.done [#allocation6], 256
    $region41: #{variable_selection_network.1} parent=1 // pred_fallthru
      _
    // Predicated region
    $region42: #{variable_selection_network.1} parent=1 // pred_check
      _
    $region43: #{variable_selection_network.1} parent=1 // pred_check_branch
      %76 = sbr.rel (0) target = $region45
    $region44: #{variable_selection_network.1} parent=1 // pred_region
      %77 = dma.done [#allocation9], 16
    $region45: #{variable_selection_network.1} parent=1 // pred_fallthru
      _
    %v79 = vld [vmem:[#allocation2] sm:$0xff]
    %v80 = vpack.c.bf16 %v79, %v79
    %v81 = vld [vmem:[#allocation5] sm:$0xf]
    %v82 = vld [vmem:[#allocation5 + $0x4] sm:$0xf]
    %v83 = vld [vmem:[%s2] sm:$0x1]
    %v85 = vlaneseq
    %v86 = vshrl.u32 %v85, 7
    %v87 = vsub.s32 0, %v86
    %v88 = vrot.slane %v83, %v87
    %v92 = vunpack.c.l.b16 %v81
    %v93 = vunpack.c.l.b16 %v82
    %v94 = vpack.c.b16 %v93, %v92
    %vm96 = vcmask 130048
    %v98 = vsel %vm96, %v80, 0
    %100 = vmatprep.subr.bf16.mxu0 0
    %101 = vmatpush1.bf16.msra.mxu0 %v94
    %102 = vmatprep.subr.bf16.mxu0 0
    %103 = vmatpush1.bf16.msra.mxu0 0
    %104 = vmatprep.subr.bf16.mxu0 0
    %105 = vmatpush1.bf16.msra.mxu0 0
    %106 = vmatprep.subr.bf16.mxu0 0
    %107 = vmatpush1.bf16.msra.mxu0 0
    %108 = vmatprep.subr.bf16.mxu0 0
    %109 = vmatpush1.bf16.msra.mxu0 0
    %110 = vmatprep.subr.bf16.mxu0 0
    %111 = vmatpush1.bf16.msra.mxu0 0
    %112 = vmatprep.subr.bf16.mxu0 0
    %113 = vmatpush1.bf16.msra.mxu0 0
    %114 = vmatprep.subr.bf16.mxu0 0
    %115 = vmatpush1.bf16.msra.mxu0 0
    %116 = vmatprep.subr.bf16.mxu0 0
    %117 = vmatpush1.bf16.msra.mxu0 0
    %118 = vmatprep.subr.bf16.mxu0 0
    %119 = vmatpush1.bf16.msra.mxu0 0
    %120 = vmatprep.subr.bf16.mxu0 0
    %121 = vmatpush1.bf16.msra.mxu0 0
    %122 = vmatprep.subr.bf16.mxu0 0
    %123 = vmatpush1.bf16.msra.mxu0 0
    %124 = vmatprep.subr.bf16.mxu0 0
    %125 = vmatpush1.bf16.msra.mxu0 0
    %126 = vmatprep.subr.bf16.mxu0 0
    %127 = vmatpush1.bf16.msra.mxu0 0
    %128 = vmatprep.subr.bf16.mxu0 0
    %129 = vmatpush1.bf16.msra.mxu0 0
    %130 = vmatprep.subr.bf16.mxu0 0
    %131 = vmatpush1.bf16.msra.mxu0 0
    %132 = vmatprep.mubr.bf16.mxu0 0
    %133 = vmatmul.mubr.bf16.gmra.mrb[0].mxu0 %v98
    %v134 = vpop.f32.mrb[0].mxu0
    %v135 = vadd.f32 %v88, %v134
    %v136 = vpop.f32.mrb[0].mxu0
    %v137 = vpop.f32.mrb[0].mxu0
    %v138 = vpop.f32.mrb[0].mxu0
    %139 = vdwg.mxu0
    %v140 = vmax.f32 %v135, 0.0
    %v141 = vpack.c.bf16 %v140, %v140
    %v142 = vld [vmem:[%s3] sm:$0xf]
    %v143 = vld [vmem:[%s3 + $0x4] sm:$0xf]
    %v144 = vld [vmem:[%s3 + $0x8] sm:$0xf]
    %v145 = vld [vmem:[%s3 + $0xc] sm:$0xf]
    %v146 = vld [vmem:[%s4] sm:$0x1]
    %v148 = vlaneseq
    %v149 = vshrl.u32 %v148, 7
    %v150 = vsub.s32 0, %v149
    %v151 = vrot.slane %v146, %v150
    %v157 = vunpack.c.l.b16 %v142
    %v158 = vunpack.c.l.b16 %v143
    %v159 = vunpack.c.l.b16 %v144
    %v160 = vunpack.c.l.b16 %v145
    %v161 = vpack.c.b16 %v158, %v157
    %v162 = vpack.c.b16 %v160, %v159
    %vm165 = vcmask 261120
    %v167 = vsel %vm165, %v141, 0
    %169 = vmatprep.subr.bf16.mxu0 0
    %170 = vmatpush1.bf16.msra.mxu0 %v161
    %171 = vmatprep.subr.bf16.mxu0 0
    %172 = vmatpush1.bf16.msra.mxu0 %v162
    %173 = vmatprep.subr.bf16.mxu0 0
    %174 = vmatpush1.bf16.msra.mxu0 0
    %175 = vmatprep.subr.bf16.mxu0 0
    %176 = vmatpush1.bf16.msra.mxu0 0
    %177 = vmatprep.subr.bf16.mxu0 0
    %178 = vmatpush1.bf16.msra.mxu0 0
    %179 = vmatprep.subr.bf16.mxu0 0
    %180 = vmatpush1.bf16.msra.mxu0 0
    %181 = vmatprep.subr.bf16.mxu0 0
    %182 = vmatpush1.bf16.msra.mxu0 0
    %183 = vmatprep.subr.bf16.mxu0 0
    %184 = vmatpush1.bf16.msra.mxu0 0
    %185 = vmatprep.subr.bf16.mxu0 0
    %186 = vmatpush1.bf16.msra.mxu0 0
    %187 = vmatprep.subr.bf16.mxu0 0
    %188 = vmatpush1.bf16.msra.mxu0 0
    %189 = vmatprep.subr.bf16.mxu0 0
    %190 = vmatpush1.bf16.msra.mxu0 0
    %191 = vmatprep.subr.bf16.mxu0 0
    %192 = vmatpush1.bf16.msra.mxu0 0
    %193 = vmatprep.subr.bf16.mxu0 0
    %194 = vmatpush1.bf16.msra.mxu0 0
    %195 = vmatprep.subr.bf16.mxu0 0
    %196 = vmatpush1.bf16.msra.mxu0 0
    %197 = vmatprep.subr.bf16.mxu0 0
    %198 = vmatpush1.bf16.msra.mxu0 0
    %199 = vmatprep.subr.bf16.mxu0 0
    %200 = vmatpush1.bf16.msra.mxu0 0
    %201 = vmatprep.mubr.bf16.mxu0 0
    %202 = vmatmul.mubr.bf16.gmra.mrb[0].mxu0 %v167
    %v203 = vpop.f32.mrb[0].mxu0
    %v204 = vadd.f32 %v151, %v203
    %v205 = vpop.f32.mrb[0].mxu0
    %v206 = vpop.f32.mrb[0].mxu0
    %v207 = vpop.f32.mrb[0].mxu0
    %208 = vdwg.mxu0
    %v209 = vld [vmem:[#allocation7] sm:$0xf]
    %v210 = vld [vmem:[#allocation7 + $0x4] sm:$0xf]
    %v211 = vld [vmem:[#allocation7 + $0x8] sm:$0xf]
    %v212 = vld [vmem:[#allocation7 + $0xc] sm:$0xf]
    %v213 = vld [vmem:[#allocation8] sm:$0x1]
    %v215 = vlaneseq
    %v216 = vshrl.u32 %v215, 7
    %v217 = vsub.s32 0, %v216
    %v218 = vrot.slane %v213, %v217
    %221 = vrot.lane.b32.xlu0 %v141, 96
    %v222 = vpop.permute.xlu0 %221
    %v227 = vunpack.c.l.b16 %v209
    %v228 = vunpack.c.l.b16 %v210
    %v229 = vunpack.c.l.b16 %v211
    %v230 = vunpack.c.l.b16 %v212
    %v231 = vpack.c.b16 %v228, %v227
    %v232 = vpack.c.b16 %v230, %v229
    %v236 = vsel %vm165, %v222, 0
    %238 = vmatprep.subr.bf16.mxu0 0
    %239 = vmatpush1.bf16.msra.mxu0 %v231
    %240 = vmatprep.subr.bf16.mxu0 0
    %241 = vmatpush1.bf16.msra.mxu0 %v232
    %242 = vmatprep.subr.bf16.mxu0 0
    %243 = vmatpush1.bf16.msra.mxu0 0
    %244 = vmatprep.subr.bf16.mxu0 0
    %245 = vmatpush1.bf16.msra.mxu0 0
    %246 = vmatprep.subr.bf16.mxu0 0
    %247 = vmatpush1.bf16.msra.mxu0 0
    %248 = vmatprep.subr.bf16.mxu0 0
    %249 = vmatpush1.bf16.msra.mxu0 0
    %250 = vmatprep.subr.bf16.mxu0 0
    %251 = vmatpush1.bf16.msra.mxu0 0
    %252 = vmatprep.subr.bf16.mxu0 0
    %253 = vmatpush1.bf16.msra.mxu0 0
    %254 = vmatprep.subr.bf16.mxu0 0
    %255 = vmatpush1.bf16.msra.mxu0 0
    %256 = vmatprep.subr.bf16.mxu0 0
    %257 = vmatpush1.bf16.msra.mxu0 0
    %258 = vmatprep.subr.bf16.mxu0 0
    %259 = vmatpush1.bf16.msra.mxu0 0
    %260 = vmatprep.subr.bf16.mxu0 0
    %261 = vmatpush1.bf16.msra.mxu0 0
    %262 = vmatprep.subr.bf16.mxu0 0
    %263 = vmatpush1.bf16.msra.mxu0 0
    %264 = vmatprep.subr.bf16.mxu0 0
    %265 = vmatpush1.bf16.msra.mxu0 0
    %266 = vmatprep.subr.bf16.mxu0 0
    %267 = vmatpush1.bf16.msra.mxu0 0
    %268 = vmatprep.subr.bf16.mxu0 0
    %269 = vmatpush1.bf16.msra.mxu0 0
    %270 = vmatprep.mubr.bf16.mxu0 0
    %271 = vmatmul.mubr.bf16.gmra.mrb[0].mxu0 %v236
    %v272 = vpop.f32.mrb[0].mxu0
    %v273 = vadd.f32 %v218, %v272
    %v274 = vpop.f32.mrb[0].mxu0
    %v275 = vpop.f32.mrb[0].mxu0
    %v276 = vpop.f32.mrb[0].mxu0
    %277 = vdwg.mxu0
    %v278 = vmul.f32 %v273, 0.5
    %v279 = vtanh.pop %v278
    %v280 = vadd.f32 %v279, 1.0
    %v281 = vmul.f32 %v280, 0.5
    %v282 = vmul.f32 %v204, %v281
    %283 = vmax.xlane.f32.xlu0 %v282
    %v284 = vpop.xlane.xlu0 %283
    %v285 = vsub.f32 %v282, %v284
    %v286 = vmul.f32 %v285, 1.442695
    %v287 = vpow.pop %v286
    %288 = vadd.xlane.f32.xlu0 %v287
    %v289 = vpop.xlane.xlu0 %288
    %v290 = vrcp.pop %v289
    %v291 = vmul.f32 %v287, %v290
    %292 = vst [vmem:[#allocation10] sm:$0xff] %v291
    // Predicated region
    $region46: #{variable_selection_network.1} parent=1 // pred_check
      _
    $region47: #{variable_selection_network.1} parent=1 // pred_check_branch
      %294 = sbr.rel (0) target = $region49
    $region48: #{variable_selection_network.1} parent=1 // pred_region
      %s296 = ssub.s32 128, 128
      %297 = vsyncadd [#allocation4], %s296
      %s299 = sshll.u32 [#allocation10], 4
      %s300 = int_to_ptr.vmem [resolvable:$true] %s299
      %302 = dma.vmem_to_hbm [thread:$0]  %s300, 128, %s7, [#allocation4]
    $region49: #{variable_selection_network.1} parent=1 // pred_fallthru
      _
    // Predicated region
    $region50: #{variable_selection_network.1} parent=1 // pred_check
      _
    $region51: #{variable_selection_network.1} parent=1 // pred_check_branch
      %304 = sbr.rel (0) target = $region53
    $region52: #{variable_selection_network.1} parent=1 // pred_region
      %305 = dma.done [#allocation4], 128
    $region53: #{variable_selection_network.1} parent=1 // pred_fallthru
      _
    %306 = vsyncpa [#allocation3], 1
    %307 = vsyncpa [#allocation6], 1
    %308 = vsyncpa [#allocation9], 1
    %309 = vsyncpa [#allocation4], 1

</llo_original>
